<compile_context>
chip_gen: v6e
topology: v6e:2x2x1
jax: 0.10.0
libtpu: 0.0.40
codegen_flags: <defaults>
</compile_context>

<pallas_src>
import jax
import jax.numpy as jnp
from jax import lax
from jax.experimental import pallas as pl
from jax.experimental.pallas import tpu as pltpu


def _round_up(x, m):
    return ((x + m - 1) // m) * m


# -----------------------------------------------------------------------------
# Kernels
# -----------------------------------------------------------------------------
def _embed_kernel_resident(x_ref, w_ref, b_ref, o_ref):
    # Single-K-step path (weight fully resident in VMEM).
    # x_ref: (tm, Kp), w_ref: (Kp, Np), b_ref: (1, Np) f32, o_ref: (tm, Np)
    y = jnp.dot(x_ref[...], w_ref[...], preferred_element_type=jnp.float32)
    y = y + b_ref[...]
    # Row-wise L2 normalize: y * rsqrt(sum(y^2)). eps guards all-zero rows.
    inv = lax.rsqrt(jnp.sum(y * y, axis=1, keepdims=True) + 1e-12)
    o_ref[...] = (y * inv).astype(o_ref.dtype)


def _embed_kernel_tiled(x_ref, w_ref, b_ref, o_ref, acc_ref):
    # K-tiled path. x_ref: (tm, tk), w_ref: (tk, Np), b_ref: (1, Np) f32,
    # o_ref: (tm, Np), acc_ref: (tm, Np) f32 scratch.
    k = pl.program_id(1)
    partial = jnp.dot(x_ref[...], w_ref[...], preferred_element_type=jnp.float32)

    @pl.when(k == 0)
    def _first():
        # Write-on-first-step (no zero-init store); fold bias in here so the
        # finalize is purely reduce + rsqrt + scale.
        acc_ref[...] = partial + b_ref[...]

    @pl.when(k > 0)
    def _rest():
        acc_ref[...] += partial

    @pl.when(k == pl.num_programs(1) - 1)
    def _finalize():
        y = acc_ref[...]
        inv = lax.rsqrt(jnp.sum(y * y, axis=1, keepdims=True) + 1e-12)
        o_ref[...] = (y * inv).astype(o_ref.dtype)


# -----------------------------------------------------------------------------
# Wrapper
# -----------------------------------------------------------------------------
def embed_forward(x, weight, bias, *, tm_max=256):
    """x: (B, ...) any trailing shape; weight: (dim_out, dim_in); bias: (dim_out,)."""
    B = x.shape[0]
    x_flat = x.reshape(B, -1)                      # (B, dim_in)
    dim_in = x_flat.shape[1]
    dim_out = weight.shape[0]
    assert weight.shape == (dim_out, dim_in)

    in_dtype = x_flat.dtype
    itemsize = jnp.dtype(in_dtype).itemsize
    out_itemsize = itemsize

    # Sublane packing: f32 -> 8 rows/vreg, bf16 -> 16, int8/fp8 -> 32.
    sub = {4: 8, 2: 16, 1: 32}.get(itemsize, 8)

    # Lane-dense padded feature dims (exact: zero K-padding adds 0 to the dot,
    # zero output columns add 0 to the L2 sum).
    Kp0 = _round_up(dim_in, 128)
    Np = _round_up(dim_out, 128)

    # --- generation-aware VMEM budget -------------------------------------
    try:
        vmem_cap = int(pltpu.get_tpu_info().vmem_capacity_bytes)
    except Exception:
        vmem_cap = 64 * 1024 * 1024            # conservative fallback (v7x-sized)
    vmem_limit = max(32 * 1024 * 1024, (vmem_cap * 3) // 4)
    budget = int(vmem_limit * 0.8)             # headroom for compiler scratch

    # --- batch tiling -------------------------------------------------------
    Bp0 = _round_up(B, sub)
    tm = min(tm_max, Bp0)

    def _fits_resident(tm_):
        # double-buffered weight + x tile + output, plus bias.
        return (2 * Kp0 * Np * itemsize
                + 2 * tm_ * Kp0 * itemsize
                + 2 * tm_ * Np * out_itemsize
                + 2 * Np * 4) <= budget

    resident = _fits_resident(tm)

    # Megacore (v7x): ensure >= 2 batch tiles when there is enough batch to
    # split — free when the weight is resident (no extra weight streaming).
    if resident and Bp0 <= tm and Bp0 >= 2 * sub:
        tm = _round_up((Bp0 + 1) // 2, sub)

    Bp = _round_up(Bp0, tm)
    mt = Bp // tm

    # --- K tiling -----------------------------------------------------------
    if resident:
        tk, Kp, kt = Kp0, Kp0, 1
    else:
        fixed = 2 * tm * Np * out_itemsize + tm * Np * 4 + 2 * Np * 4
        per_k128 = 2 * (tm * 128 + 128 * Np) * itemsize    # x + W per 128 of K
        tk_units = max(1, (budget - fixed) // per_k128)
        tk = int(min(Kp0 // 128, tk_units)) * 128
        tk = max(tk, 128)
        Kp = _round_up(Kp0, tk)
        kt = Kp // tk

    # --- host-side layout prep: pad + pre-transpose the (static) weight -----
    xp = x_flat
    if (Bp, Kp) != (B, dim_in):
        xp = jnp.pad(x_flat, ((0, Bp - B), (0, Kp - dim_in)))
    wT = weight.T                                  # (dim_in, dim_out), one-time
    if (Kp, Np) != (dim_in, dim_out):
        wT = jnp.pad(wT, ((0, Kp - dim_in), (0, Np - dim_out)))
    b2 = bias.astype(jnp.float32)
    if Np != dim_out:
        b2 = jnp.pad(b2, (0, Np - dim_out))
    b2 = b2.reshape(1, Np)

    w_bytes = Kp * Np * itemsize
    cost = pl.CostEstimate(
        flops=2 * Bp * Kp * Np,
        transcendentals=Bp,
        bytes_accessed=(Bp * Kp * itemsize
                        + w_bytes * (1 if resident else mt)   # W streamed per batch tile if tiled
                        + Np * 4
                        + Bp * Np * out_itemsize))

    cparams = pltpu.CompilerParams(
        dimension_semantics=("parallel",) if kt == 1 else ("parallel", "arbitrary"),
        vmem_limit_bytes=vmem_limit)

    if kt == 1:
        out = pl.pallas_call(
            _embed_kernel_resident,
            out_shape=jax.ShapeDtypeStruct((Bp, Np), in_dtype),
            grid_spec=pltpu.PrefetchScalarGridSpec(
                num_scalar_prefetch=0,
                grid=(mt,),
                in_specs=[
                    pl.BlockSpec((tm, Kp), lambda i: (i, 0)),     # x tile
                    pl.BlockSpec((Kp, Np), lambda i: (0, 0)),     # resident weight
                    pl.BlockSpec((1, Np), lambda i: (0, 0)),      # bias (f32)
                ],
                out_specs=pl.BlockSpec((tm, Np), lambda i: (i, 0)),
            ),
            compiler_params=cparams,
            cost_estimate=cost,
        )(xp, wT, b2)
    else:
        out = pl.pallas_call(
            _embed_kernel_tiled,
            out_shape=jax.ShapeDtypeStruct((Bp, Np), in_dtype),
            grid_spec=pltpu.PrefetchScalarGridSpec(
                num_scalar_prefetch=0,
                grid=(mt, kt),                                    # (batch, K-reduction)
                in_specs=[
                    pl.BlockSpec((tm, tk), lambda i, k: (i, k)),  # x tile
                    pl.BlockSpec((tk, Np), lambda i, k: (k, 0)),  # W tile (pre-transposed)
                    pl.BlockSpec((1, Np), lambda i, k: (0, 0)),   # bias (f32)
                ],
                out_specs=pl.BlockSpec((tm, Np), lambda i, k: (i, 0)),
                scratch_shapes=[pltpu.VMEM((tm, Np), jnp.float32)],
            ),
            compiler_params=cparams,
            cost_estimate=cost,
        )(xp, wT, b2)

    if (Bp, Np) != (B, dim_out):
        out = out[:B, :dim_out]
    return out


def _reference(x, weight, bias):
    B = x.shape[0]
    xf = x.reshape(B, -1).astype(jnp.float32)
    y = xf @ weight.T.astype(jnp.float32) + bias.astype(jnp.float32)
    norm = jnp.sqrt(jnp.sum(y * y, axis=1, keepdims=True))
    return y / norm


if __name__ == "__main__":
    # Small shapes consistent with the module: dim_in = C*H*W = 4*8*8 = 256,
    # dim_out = 128 (nn.Linear(256, 128) + L2 norm).
    B, C, H, W = 8, 4, 8, 8
    dim_out = 128
    dim_in = C * H * W

    key = jax.random.PRNGKey(0)
    kx, kw, kb = jax.random.split(key, 3)

    x = jax.random.normal(kx, (B, C, H, W), dtype=jnp.float32)
    weight = jax.random.normal(kw, (dim_out, dim_in), dtype=jnp.float32) * 0.02
    bias = jax.random.normal(kb, (dim_out,), dtype=jnp.float32) * 0.01

    out = embed_forward(x, weight, bias)
    out = jax.block_until_ready(out)

    ref = _reference(x, weight, bias)
    assert out.shape == (B, dim_out)
    assert jnp.allclose(out, ref, atol=1e-5, rtol=1e-5), "mismatch vs reference"

    print("KERNEL_OK")
</pallas_src>

<mosaic_0001>
module attributes {stable_mosaic.version = 11 : i64} {
  func.func @_embed_kernel_resident(%arg0: i32, %arg1: memref<8x256xf32, #tpu.memory_space<vmem>>, %arg2: memref<256x128xf32, #tpu.memory_space<vmem>>, %arg3: memref<1x128xf32, #tpu.memory_space<vmem>>, %arg4: memref<8x128xf32, #tpu.memory_space<vmem>>) attributes {dimension_semantics = [#tpu.dimension_semantics<parallel>], iteration_bounds = array<i64: 1>, scalar_prefetch = 0 : i64, scratch_operands = 0 : i64, tpu.core_type = #tpu.core_type<tc>, window_params = [{transform_indices = @transform_0, window_bounds = array<i64: 8, 256>}, {pipeline_mode = #tpu.pipeline_mode<synchronous>, transform_indices = @transform_1, window_bounds = array<i64: 256, 128>}, {pipeline_mode = #tpu.pipeline_mode<synchronous>, transform_indices = @transform_2, window_bounds = array<i64: 1, 128>}, {transform_indices = @transform_3, window_bounds = array<i64: 8, 128>}]} {
    %c0 = arith.constant 0 : index
    %c0_0 = arith.constant 0 : index
    %0 = vector.load %arg1[%c0, %c0_0] : memref<8x256xf32, #tpu.memory_space<vmem>>, vector<8x256xf32>
    %c0_1 = arith.constant 0 : index
    %c0_2 = arith.constant 0 : index
    %1 = vector.load %arg2[%c0_1, %c0_2] : memref<256x128xf32, #tpu.memory_space<vmem>>, vector<256x128xf32>
    %cst = arith.constant dense<0.000000e+00> : vector<8x128xf32>
    %2 = tpu.matmul %0, %1, %cst {dimension_numbers = #tpu.dot_dimension_numbers<[1], [0], [0], [1], [0, 0, 1, 1], [], []>} : vector<8x256xf32>, vector<256x128xf32>, vector<8x128xf32> -> vector<8x128xf32>
    %c0_3 = arith.constant 0 : index
    %c0_4 = arith.constant 0 : index
    %3 = vector.load %arg3[%c0_3, %c0_4] : memref<1x128xf32, #tpu.memory_space<vmem>>, vector<1x128xf32>
    %4 = vector.broadcast %3 : vector<1x128xf32> to vector<8x128xf32>
    %5 = arith.addf %2, %4 : vector<8x128xf32>
    %6 = arith.mulf %5, %5 : vector<8x128xf32>
    %cst_5 = arith.constant dense<0.000000e+00> : vector<8xf32>
    %7 = vector.multi_reduction <add>, %6, %cst_5 [1] : vector<8x128xf32> to vector<8xf32>
    %8 = vector.shape_cast %7 : vector<8xf32> to vector<8x1xf32>
    %cst_6 = arith.constant 9.99999996E-13 : f32
    %9 = vector.broadcast %cst_6 : f32 to vector<8x1xf32>
    %10 = arith.addf %8, %9 : vector<8x1xf32>
    %11 = math.rsqrt %10 : vector<8x1xf32>
    %12 = vector.broadcast %11 : vector<8x1xf32> to vector<8x128xf32>
    %13 = arith.mulf %5, %12 : vector<8x128xf32>
    %c0_7 = arith.constant 0 : index
    %c0_8 = arith.constant 0 : index
    %14 = vector.load %arg4[%c0_7, %c0_8] : memref<8x128xf32, #tpu.memory_space<vmem>>, vector<8x128xf32>
    tpu.vector_store %arg4[%c0_7, %c0_8], %13 {strides = array<i32>} : memref<8x128xf32, #tpu.memory_space<vmem>>, vector<8x128xf32>,
    return
  }
  func.func @transform_0(%arg0: i32) -> (i32, i32) {
    %c0_i32 = arith.constant 0 : i32
    %c0_i32_0 = arith.constant 0 : i32
    return %arg0, %c0_i32 : i32, i32
  }
  func.func @transform_1(%arg0: i32) -> (i32, i32) {
    %c0_i32 = arith.constant 0 : i32
    %c0_i32_0 = arith.constant 0 : i32
    %c0_i32_1 = arith.constant 0 : i32
    return %c0_i32, %c0_i32_0 : i32, i32
  }
  func.func @transform_2(%arg0: i32) -> (i32, i32) {
    %c0_i32 = arith.constant 0 : i32
    %c0_i32_0 = arith.constant 0 : i32
    %c0_i32_1 = arith.constant 0 : i32
    return %c0_i32, %c0_i32_0 : i32, i32
  }
  func.func @transform_3(%arg0: i32) -> (i32, i32) {
    %c0_i32 = arith.constant 0 : i32
    %c0_i32_0 = arith.constant 0 : i32
    return %arg0, %c0_i32 : i32, i32
  }
}

</mosaic_0001>

<llo_original>
// kernel: tpu_custom_call.1
$region0: #{tpu_custom_call.1}
  #allocation0 [shape = 'u32[]', space=smem, size = 0x4, offset = 0x4, fixed_abs, tag = 'smem constant byte address 0x4 - core index']
  #allocation1 [shape = 'u32[144,128]{1,0:T(1,128)}', space=vmem, size = 0x12000, scoped, tag = 'internal scratch']
  %s0 = inlined_call_operand.hbm [shape: f32[8,256], index: 0, kind: input, shape index: {}]
  %s1 = inlined_call_operand.hbm [shape: f32[256,128], index: 1, kind: input, shape index: {}]
  %s2 = inlined_call_operand.vmem [shape: f32[1,128], index: 2, kind: input, shape index: {}]
  %s3 = inlined_call_operand.hbm [shape: f32[8,128], index: 3, kind: output, shape index: {}]
  %s4 = sld [smem:[#allocation0]]
  $region30: #{tpu_custom_call.1} parent=0
    _
  %s6 = ssub.s32 1, %s4
  %s7 = scalar_select 0, %s6, %s4
  $region1: #{tpu_custom_call.1} parent=0
    #allocation2 [shape = 'u8[8192]{0}', space=vmem, size = 0x2000, scoped, tag = 'input window, operand 0, single buffered']
    #allocation3 [shape = 's32[1]{0}', space=sflag, size = 0x4, scoped, tag = 'scoped memory for tpu_custom_call.1']
    #allocation4 [shape = 's32[1]{0}', space=sflag, size = 0x4, scoped, tag = 'scoped memory for tpu_custom_call.1']
    #allocation5 [shape = 'u8[131072]{0}', space=vmem, size = 0x20000, scoped, tag = 'input window, operand 1, single buffered']
    #allocation6 [shape = 's32[1]{0}', space=sflag, size = 0x4, scoped, tag = 'scoped memory for tpu_custom_call.1']
    #allocation7 [shape = 'u8[4096]{0}', space=vmem, size = 0x1000, scoped, tag = 'output window, operand 0, single buffered']
    %8 = vsyncpa [#allocation3], 0
    %9 = vsyncpa [#allocation6], 0
    %10 = vsyncpa [#allocation4], 0
    // Predicated region
    $region2: #{tpu_custom_call.1} parent=1 // pred_check
      _
    $region3: #{tpu_custom_call.1} parent=1 // pred_check_branch
      %12 = sbr.rel (0) target = $region5
    $region4: #{tpu_custom_call.1} parent=1 // pred_region
      %s14 = ssub.s32 256, 256
      %15 = vsyncadd [#allocation3], %s14
      %s17 = sshll.u32 [#allocation2], 4
      %s18 = int_to_ptr.vmem [resolvable:$true] %s17
      %20 = dma.hbm_to_vmem [thread:$0]  %s0, 256, %s18, [#allocation3]
    $region5: #{tpu_custom_call.1} parent=1 // pred_fallthru
      _
    // Predicated region
    $region6: #{tpu_custom_call.1} parent=1 // pred_check
      _
    $region7: #{tpu_custom_call.1} parent=1 // pred_check_branch
      %22 = sbr.rel (0) target = $region9
    $region8: #{tpu_custom_call.1} parent=1 // pred_region
      %s24 = ssub.s32 4096, 4096
      %25 = vsyncadd [#allocation6], %s24
      %s26 = sshll.u32 [#allocation5], 4
      %s27 = int_to_ptr.vmem [resolvable:$true] %s26
      %32 = dma.hbm_to_vmem [thread:$0]  %s1, 4096, %s27, [#allocation6], 128, 128, 8
    $region9: #{tpu_custom_call.1} parent=1 // pred_fallthru
      _
    // Predicated region
    $region10: #{tpu_custom_call.1} parent=1 // pred_check
      _
    $region11: #{tpu_custom_call.1} parent=1 // pred_check_branch
      %34 = sbr.rel (0) target = $region13
    $region12: #{tpu_custom_call.1} parent=1 // pred_region
      _
    $region13: #{tpu_custom_call.1} parent=1 // pred_fallthru
      _
    // Predicated region
    $region14: #{tpu_custom_call.1} parent=1 // pred_check
      _
    $region15: #{tpu_custom_call.1} parent=1 // pred_check_branch
      %36 = sbr.rel (0) target = $region17
    $region16: #{tpu_custom_call.1} parent=1 // pred_region
      %37 = dma.done [#allocation3], 256
    $region17: #{tpu_custom_call.1} parent=1 // pred_fallthru
      _
    // Predicated region
    $region18: #{tpu_custom_call.1} parent=1 // pred_check
      _
    $region19: #{tpu_custom_call.1} parent=1 // pred_check_branch
      %39 = sbr.rel (0) target = $region21
    $region20: #{tpu_custom_call.1} parent=1 // pred_region
      %40 = dma.done [#allocation6], 4096
    $region21: #{tpu_custom_call.1} parent=1 // pred_fallthru
      _
    %v41 = vld [vmem:[#allocation2] sm:$0xff]
    %v42 = vld [vmem:[#allocation2 + $0x8] sm:$0xff]
    %v43 = vld [vmem:[#allocation5] sm:$0xff]
    %v44 = vld [vmem:[#allocation5 + $0x8] sm:$0xff]
    %v45 = vld [vmem:[#allocation5 + $0x10] sm:$0xff]
    %v46 = vld [vmem:[#allocation5 + $0x18] sm:$0xff]
    %v47 = vld [vmem:[#allocation5 + $0x20] sm:$0xff]
    %v48 = vld [vmem:[#allocation5 + $0x28] sm:$0xff]
    %v49 = vld [vmem:[#allocation5 + $0x30] sm:$0xff]
    %v50 = vld [vmem:[#allocation5 + $0x38] sm:$0xff]
    %v51 = vld [vmem:[#allocation5 + $0x40] sm:$0xff]
    %v52 = vld [vmem:[#allocation5 + $0x48] sm:$0xff]
    %v53 = vld [vmem:[#allocation5 + $0x50] sm:$0xff]
    %v54 = vld [vmem:[#allocation5 + $0x58] sm:$0xff]
    %v55 = vld [vmem:[#allocation5 + $0x60] sm:$0xff]
    %v56 = vld [vmem:[#allocation5 + $0x68] sm:$0xff]
    %v57 = vld [vmem:[#allocation5 + $0x70] sm:$0xff]
    %v58 = vld [vmem:[#allocation5 + $0x78] sm:$0xff]
    %v59 = vld [vmem:[#allocation5 + $0x80] sm:$0xff]
    %v60 = vld [vmem:[#allocation5 + $0x88] sm:$0xff]
    %v61 = vld [vmem:[#allocation5 + $0x90] sm:$0xff]
    %v62 = vld [vmem:[#allocation5 + $0x98] sm:$0xff]
    %v63 = vld [vmem:[#allocation5 + $0xa0] sm:$0xff]
    %v64 = vld [vmem:[#allocation5 + $0xa8] sm:$0xff]
    %v65 = vld [vmem:[#allocation5 + $0xb0] sm:$0xff]
    %v66 = vld [vmem:[#allocation5 + $0xb8] sm:$0xff]
    %v67 = vld [vmem:[#allocation5 + $0xc0] sm:$0xff]
    %v68 = vld [vmem:[#allocation5 + $0xc8] sm:$0xff]
    %v69 = vld [vmem:[#allocation5 + $0xd0] sm:$0xff]
    %v70 = vld [vmem:[#allocation5 + $0xd8] sm:$0xff]
    %v71 = vld [vmem:[#allocation5 + $0xe0] sm:$0xff]
    %v72 = vld [vmem:[#allocation5 + $0xe8] sm:$0xff]
    %v73 = vld [vmem:[#allocation5 + $0xf0] sm:$0xff]
    %v74 = vld [vmem:[#allocation5 + $0xf8] sm:$0xff]
    %v75 = vld [vmem:[%s2] sm:$0x1]
    %v77 = vlaneseq
    %v78 = vshrl.u32 %v77, 7
    %v79 = vsub.s32 0, %v78
    %v80 = vrot.slane %v75, %v79
    %82 = vmatprep.subr.mxu0 0.0
    %83 = vmatpush1.msra.mxu0 %v58
    %84 = vmatprep.subr.mxu0 0.0
    %85 = vmatpush1.msra.mxu0 %v57
    %86 = vmatprep.subr.mxu0 0.0
    %87 = vmatpush1.msra.mxu0 %v56
    %88 = vmatprep.subr.mxu0 0.0
    %89 = vmatpush1.msra.mxu0 %v55
    %90 = vmatprep.subr.mxu0 0.0
    %91 = vmatpush1.msra.mxu0 %v54
    %92 = vmatprep.subr.mxu0 0.0
    %93 = vmatpush1.msra.mxu0 %v53
    %94 = vmatprep.subr.mxu0 0.0
    %95 = vmatpush1.msra.mxu0 %v52
    %96 = vmatprep.subr.mxu0 0.0
    %97 = vmatpush1.msra.mxu0 %v51
    %98 = vmatprep.subr.mxu0 0.0
    %99 = vmatpush1.msra.mxu0 %v50
    %100 = vmatprep.subr.mxu0 0.0
    %101 = vmatpush1.msra.mxu0 %v49
    %102 = vmatprep.subr.mxu0 0.0
    %103 = vmatpush1.msra.mxu0 %v48
    %104 = vmatprep.subr.mxu0 0.0
    %105 = vmatpush1.msra.mxu0 %v47
    %106 = vmatprep.subr.mxu0 0.0
    %107 = vmatpush1.msra.mxu0 %v46
    %108 = vmatprep.subr.mxu0 0.0
    %109 = vmatpush1.msra.mxu0 %v45
    %110 = vmatprep.subr.mxu0 0.0
    %111 = vmatpush1.msra.mxu0 %v44
    %112 = vmatprep.subr.mxu0 0.0
    %113 = vmatpush1.msra.mxu0 %v43
    %114 = vmatprep.subr.mxu0 0.0
    %115 = vmatpush2.msra.mxu0 %v74
    %116 = vmatprep.subr.mxu0 0.0
    %117 = vmatpush2.msra.mxu0 %v73
    %118 = vmatprep.subr.mxu0 0.0
    %119 = vmatpush2.msra.mxu0 %v72
    %120 = vmatprep.subr.mxu0 0.0
    %121 = vmatpush2.msra.mxu0 %v71
    %122 = vmatprep.subr.mxu0 0.0
    %123 = vmatpush2.msra.mxu0 %v70
    %124 = vmatprep.subr.mxu0 0.0
    %125 = vmatpush2.msra.mxu0 %v69
    %126 = vmatprep.subr.mxu0 0.0
    %127 = vmatpush2.msra.mxu0 %v68
    %128 = vmatprep.subr.mxu0 0.0
    %129 = vmatpush2.msra.mxu0 %v67
    %130 = vmatprep.subr.mxu0 0.0
    %131 = vmatpush2.msra.mxu0 %v66
    %132 = vmatprep.subr.mxu0 0.0
    %133 = vmatpush2.msra.mxu0 %v65
    %134 = vmatprep.subr.mxu0 0.0
    %135 = vmatpush2.msra.mxu0 %v64
    %136 = vmatprep.subr.mxu0 0.0
    %137 = vmatpush2.msra.mxu0 %v63
    %138 = vmatprep.subr.mxu0 0.0
    %139 = vmatpush2.msra.mxu0 %v62
    %140 = vmatprep.subr.mxu0 0.0
    %141 = vmatpush2.msra.mxu0 %v61
    %142 = vmatprep.subr.mxu0 0.0
    %143 = vmatpush2.msra.mxu0 %v60
    %144 = vmatprep.subr.mxu0 0.0
    %145 = vmatpush2.msra.mxu0 %v59
    %146 = vmatprep.mubr.f32.mxu0 %v42
    %147 = vmatmul.mubr.f32.gmra.mxu0 %v41
    %v148 = vpop.f32.mrf.mxu0
    %v149 = vadd.f32 %v80, %v148
    %v150 = vpop.f32.mrf.mxu0
    %151 = vdwg.mxu0
    %v152 = vmul.f32 %v149, %v149
    %153 = vadd.xlane.f32.xlu0 %v152
    %v154 = vpop.xlane.xlu0 %153
    %v155 = vadd.f32 %v154, 1e-12
    %v156 = vrsqrt.pop %v155
    %v157 = vmul.f32 %v149, %v156
    %158 = vst [vmem:[#allocation7] sm:$0xff] %v157
    // Predicated region
    $region22: #{tpu_custom_call.1} parent=1 // pred_check
      _
    $region23: #{tpu_custom_call.1} parent=1 // pred_check_branch
      %160 = sbr.rel (0) target = $region25
    $region24: #{tpu_custom_call.1} parent=1 // pred_region
      %s162 = ssub.s32 128, 128
      %163 = vsyncadd [#allocation4], %s162
      %s165 = sshll.u32 [#allocation7], 4
      %s166 = int_to_ptr.vmem [resolvable:$true] %s165
      %168 = dma.vmem_to_hbm [thread:$0]  %s166, 128, %s3, [#allocation4]
    $region25: #{tpu_custom_call.1} parent=1 // pred_fallthru
      _
    // Predicated region
    $region26: #{tpu_custom_call.1} parent=1 // pred_check
      _
    $region27: #{tpu_custom_call.1} parent=1 // pred_check_branch
      %170 = sbr.rel (0) target = $region29
    $region28: #{tpu_custom_call.1} parent=1 // pred_region
      %171 = dma.done [#allocation4], 128
    $region29: #{tpu_custom_call.1} parent=1 // pred_fallthru
      _
    %172 = vsyncpa [#allocation3], 1
    %173 = vsyncpa [#allocation6], 1
    %174 = vsyncpa [#allocation4], 1

</llo_original>
